<compile_context>
chip_gen: v5e
topology: v5e:2x2
jax: 0.10.0
libtpu: 0.0.40
codegen_flags: <defaults>
</compile_context>

<pallas_src>
import functools

import jax
import jax.numpy as jnp
import numpy as np
from jax.experimental import pallas as pl
from jax.experimental.pallas import tpu as pltpu

_MAX_TILE_ROWS = 4096  # 4096 x 128 x 2B = 1 MiB per int16 buffer


def _round_up(x: int, m: int) -> int:
    return ((x + m - 1) // m) * m


def _choose_tile_rows(rows: int) -> int:
    """Row-tile size: multiple of 16 (int16 sublane packing), capped at
    _MAX_TILE_ROWS, and small enough to give >= 2 grid steps on non-tiny
    inputs so v7x's two TensorCores both get work."""
    rows = max(rows, 1)
    if rows <= 32:
        return _round_up(rows, 16)          # tiny input: single block
    half = _round_up((rows + 1) // 2, 16)   # keep >= 2 grid steps
    return min(_MAX_TILE_ROWS, half)


def _indices_to_nameids_kernel(idx_ref, out_ref, *, padding_idx, num_classes):
    """Pure-VPU elementwise validity fold on lane-dense (tile_rows, 128) tiles.

    Invalid slots (negative ragged pad, padding_idx, out-of-range class) are
    written as -1; valid slots carry the raw class index.
    """
    idx = idx_ref[...]                                    # (tr, 128) int16/int32
    valid = jnp.logical_and(idx >= 0, idx < num_classes)
    if padding_idx is not None:
        valid = jnp.logical_and(valid, idx != padding_idx)
    out_ref[...] = jnp.where(valid, idx, -1).astype(out_ref.dtype)


def indices_to_nameids(packed, *, padding_idx, num_classes, tile_rows):
    """Pallas wrapper.

    packed: (rows_p, 128) int16/int32 lane-dense array, rows_p % tile_rows == 0,
            ragged/pad slots already filled with -1 on the host.
    Returns the same-shaped array with invalid slots set to -1.
    """
    rows_p, lanes = packed.shape
    assert lanes == 128 and rows_p % tile_rows == 0

    kernel = functools.partial(
        _indices_to_nameids_kernel,
        padding_idx=padding_idx,
        num_classes=num_classes,
    )

    return pl.pallas_call(
        kernel,
        out_shape=jax.ShapeDtypeStruct((rows_p, 128), packed.dtype),
        grid=(rows_p // tile_rows,),
        in_specs=[pl.BlockSpec((tile_rows, 128), lambda i: (i, 0))],
        out_specs=pl.BlockSpec((tile_rows, 128), lambda i: (i, 0)),
        compiler_params=pltpu.CompilerParams(
            dimension_semantics=("parallel",),  # shard rows across TCs on v7x
        ),
    )(packed)


def _pack_indices(sample_rows, dtype):
    """Host-side (numpy) packing of ragged rows into a lane-dense, tile-aligned
    (rows_p, 128) matrix with -1 as the pad sentinel. No device-side copies."""
    b = len(sample_rows)
    k = max(1, max((r.size for r in sample_rows), default=1))
    kp = _round_up(k, 128)
    rows = b * (kp // 128)
    tile_rows = _choose_tile_rows(rows)
    rows_p = _round_up(rows, tile_rows)

    packed = np.full((rows_p, 128), -1, dtype=dtype)
    view = packed[:rows].reshape(b, kp)      # view into the same buffer
    for i, r in enumerate(sample_rows):
        view[i, : r.size] = r
    return packed, tile_rows, b, k, kp, rows


class IndicesToMultinames:
    """JAX/Pallas port of torchwrench.nn.modules.multilabel.IndicesToMultinames."""

    def __init__(self, idx_to_name, *, padding_idx=None):
        self.idx_to_name = dict(idx_to_name)
        self.padding_idx = padding_idx
        self.num_classes = max(self.idx_to_name.keys()) + 1

        # int16 I/O when the class range fits -> half the HBM + PCIe bytes.
        self._io_dtype = np.int16 if self.num_classes <= 32767 else np.int32

        # Host-side decode table (class index -> name).
        self._names_arr = np.empty(self.num_classes, dtype=object)
        for i in range(self.num_classes):
            self._names_arr[i] = self.idx_to_name.get(i)

    def __call__(self, indices):
        rows_list = [np.asarray(r, dtype=np.int64).reshape(-1) for r in indices]
        if len(rows_list) == 0:
            return []
        sample_rows = [r.astype(self._io_dtype) for r in rows_list]

        packed, tile_rows, b, k, kp, rows = _pack_indices(sample_rows, self._io_dtype)
        name_ids = indices_to_nameids(
            jnp.asarray(packed),
            padding_idx=self.padding_idx,
            num_classes=self.num_classes,
            tile_rows=tile_rows,
        )
        host = np.asarray(jax.device_get(name_ids))        # device_get syncs
        flat = host[:rows].reshape(b, kp)[:, :k]           # numpy view, host-side

        # TODO(synk): the int -> Python-object (string) name mapping and ragged
        # list packing have no Pallas equivalent; done on the host. Out-of-range
        # indices are silently dropped here (the PyTorch module would KeyError).
        out = []
        for bi in range(b):
            row = flat[bi]
            cls = row[row >= 0]
            out.append(list(self._names_arr[cls]))
        return out


def _reference_indices_to_multinames(indices, idx_to_name, padding_idx):
    """Pure-python reference matching indices_to_multinames semantics."""
    out = []
    for row in indices:
        out.append(
            [
                idx_to_name[int(i)]
                for i in row
                if padding_idx is None or int(i) != padding_idx
            ]
        )
    return out


if __name__ == "__main__":
    num_classes = 32
    padding_idx = 31  # dedicated padding class
    idx_to_name = {i: f"name_{i}" for i in range(num_classes)}

    # Deterministic small ragged input: batch=2, up to 8 indices per sample.
    key = jax.random.PRNGKey(0)
    k0, k1 = jax.random.split(key)
    row0 = jax.random.randint(k0, (5,), 0, num_classes - 1).tolist()
    row1 = jax.random.randint(k1, (3,), 0, num_classes - 1).tolist()
    # Include an explicit padding entry to exercise the mask path.
    indices = [row0 + [padding_idx], row1]

    # Run the kernel once directly and block on its result.
    sample_rows = [np.asarray(r, dtype=np.int16).reshape(-1) for r in indices]
    packed, tile_rows, *_ = _pack_indices(sample_rows, np.int16)
    name_ids = indices_to_nameids(
        jnp.asarray(packed),
        padding_idx=padding_idx,
        num_classes=num_classes,
        tile_rows=tile_rows,
    )
    name_ids = jax.block_until_ready(name_ids)

    # Full module path (kernel + host glue) checked against the reference.
    module = IndicesToMultinames(idx_to_name, padding_idx=padding_idx)
    names = module(indices)
    ref = _reference_indices_to_multinames(indices, idx_to_name, padding_idx)
    assert names == ref, (names, ref)
    print("KERNEL_OK")
</pallas_src>

<mosaic_0001>
module attributes {stable_mosaic.version = 11 : i64} {
  func.func @_indices_to_nameids_kernel(%arg0: i32, %arg1: memref<16x128xi16, #tpu.memory_space<vmem>>, %arg2: memref<16x128xi16, #tpu.memory_space<vmem>>) attributes {dimension_semantics = [#tpu.dimension_semantics<parallel>], iteration_bounds = array<i64: 1>, scalar_prefetch = 0 : i64, scratch_operands = 0 : i64, tpu.core_type = #tpu.core_type<tc>, window_params = [{transform_indices = @transform_0, window_bounds = array<i64: 16, 128>}, {transform_indices = @transform_1, window_bounds = array<i64: 16, 128>}]} {
    %c0 = arith.constant 0 : index
    %c0_0 = arith.constant 0 : index
    %0 = vector.load %arg1[%c0, %c0_0] : memref<16x128xi16, #tpu.memory_space<vmem>>, vector<16x128xi16>
    %c0_i16 = arith.constant 0 : i16
    %1 = vector.broadcast %c0_i16 : i16 to vector<16x128xi16>
    %2 = arith.cmpi sge, %0, %1 : vector<16x128xi16>
    %c32_i16 = arith.constant 32 : i16
    %3 = vector.broadcast %c32_i16 : i16 to vector<16x128xi16>
    %4 = arith.cmpi slt, %0, %3 : vector<16x128xi16>
    %5 = arith.andi %2, %4 : vector<16x128xi1>
    %c31_i16 = arith.constant 31 : i16
    %6 = vector.broadcast %c31_i16 : i16 to vector<16x128xi16>
    %7 = arith.cmpi ne, %0, %6 : vector<16x128xi16>
    %8 = arith.andi %5, %7 : vector<16x128xi1>
    %c-1_i32 = arith.constant -1 : i32
    %9 = arith.trunci %c-1_i32 : i32 to i16
    %10 = vector.broadcast %9 : i16 to vector<16x128xi16>
    %11 = arith.select %8, %0, %10 : vector<16x128xi1>, vector<16x128xi16>
    %c0_1 = arith.constant 0 : index
    %c0_2 = arith.constant 0 : index
    %12 = vector.load %arg2[%c0_1, %c0_2] : memref<16x128xi16, #tpu.memory_space<vmem>>, vector<16x128xi16>
    tpu.vector_store %arg2[%c0_1, %c0_2], %11 {strides = array<i32>} : memref<16x128xi16, #tpu.memory_space<vmem>>, vector<16x128xi16>,
    return
  }
  func.func @transform_0(%arg0: i32) -> (i32, i32) {
    %c0_i32 = arith.constant 0 : i32
    %c0_i32_0 = arith.constant 0 : i32
    return %arg0, %c0_i32 : i32, i32
  }
  func.func @transform_1(%arg0: i32) -> (i32, i32) {
    %c0_i32 = arith.constant 0 : i32
    %c0_i32_0 = arith.constant 0 : i32
    return %arg0, %c0_i32 : i32, i32
  }
}

</mosaic_0001>

<llo_original>
// kernel: tpu_custom_call.1
$region0: #{tpu_custom_call.1}
  #allocation0 [shape = 'u32[]', space=smem, size = 0x4, offset = 0x4, fixed_abs, tag = 'smem constant byte address 0x4 - core index']
  #allocation1 [shape = 'u32[72,128]{1,0:T(1,128)}', space=vmem, size = 0x9000, scoped, tag = 'internal scratch']
  %s0 = inlined_call_operand.hbm [shape: s16[16,128], index: 0, kind: input, shape index: {}]
  %s1 = inlined_call_operand.hbm [shape: s16[16,128], index: 1, kind: output, shape index: {}]
  %s2 = sld [smem:[#allocation0]]
  $region18: #{tpu_custom_call.1} parent=0
    _
  %s4 = ssub.s32 1, %s2
  %s5 = scalar_select 0, %s4, %s2
  $region1: #{tpu_custom_call.1} parent=0
    #allocation2 [shape = 'u8[4096]{0}', space=vmem, size = 0x1000, scoped, tag = 'input window, operand 0, single buffered']
    #allocation3 [shape = 's32[1]{0}', space=sflag, size = 0x4, scoped, tag = 'scoped memory for tpu_custom_call.1']
    #allocation4 [shape = 's32[1]{0}', space=sflag, size = 0x4, scoped, tag = 'scoped memory for tpu_custom_call.1']
    #allocation5 [shape = 'u8[4096]{0}', space=vmem, size = 0x1000, scoped, tag = 'output window, operand 0, single buffered']
    %6 = vsyncpa [#allocation3], 0
    %7 = vsyncpa [#allocation4], 0
    // Predicated region
    $region2: #{tpu_custom_call.1} parent=1 // pred_check
      _
    $region3: #{tpu_custom_call.1} parent=1 // pred_check_branch
      %9 = sbr.rel (0) target = $region5
    $region4: #{tpu_custom_call.1} parent=1 // pred_region
      %11 = vsyncadd [#allocation3], 0
      %s12 = sshll.u32 %s0, 4
      %s13 = int_to_ptr.hbm [resolvable:$true] %s12
      %s14 = sshll.u32 [#allocation2], 4
      %s15 = int_to_ptr.vmem [resolvable:$true] %s14
      %20 = dma.hbm_to_vmem [thread:$0]  %s13, 128, %s15, [#allocation3], 64, 64, 4
    $region5: #{tpu_custom_call.1} parent=1 // pred_fallthru
      _
    // Predicated region
    $region6: #{tpu_custom_call.1} parent=1 // pred_check
      _
    $region7: #{tpu_custom_call.1} parent=1 // pred_check_branch
      %22 = sbr.rel (0) target = $region9
    $region8: #{tpu_custom_call.1} parent=1 // pred_region
      %24 = dma.done [#allocation3], 128
    $region9: #{tpu_custom_call.1} parent=1 // pred_fallthru
      _
    %v29 = vld [vmem:[#allocation2] sm:$0xf]
    %v30 = vld [vmem:[#allocation2 + $0x4] sm:$0xf]
    %v31 = vunpack.c.l.b16 %v29
    %v32 = vunpack.c.h.b16 %v29
    %v33 = vunpack.c.l.b16 0
    %v34 = vunpack.c.h.b16 0
    %vm35 = vcmp.ge.s32.totalorder %v31, %v33
    %vm36 = vcmp.ge.s32.totalorder %v32, %v34
    %vm37 = vmpackc.low %vm36, %vm35
    %v38 = vunpack.c.l.b16 %v30
    %v39 = vunpack.c.h.b16 %v30
    %v40 = vunpack.c.l.b16 0
    %v41 = vunpack.c.h.b16 0
    %vm42 = vcmp.ge.s32.totalorder %v38, %v40
    %vm43 = vcmp.ge.s32.totalorder %v39, %v41
    %vm44 = vmpackc.low %vm43, %vm42
    %v45 = vunpack.c.l.b16 %v29
    %v46 = vunpack.c.h.b16 %v29
    %v47 = vunpack.c.l.b16 2097184
    %v48 = vunpack.c.h.b16 2097184
    %vm49 = vcmp.lt.s32.totalorder %v45, %v47
    %vm50 = vcmp.lt.s32.totalorder %v46, %v48
    %vm51 = vmpackc.low %vm50, %vm49
    %v52 = vunpack.c.l.b16 %v30
    %v53 = vunpack.c.h.b16 %v30
    %v54 = vunpack.c.l.b16 2097184
    %v55 = vunpack.c.h.b16 2097184
    %vm56 = vcmp.lt.s32.totalorder %v52, %v54
    %vm57 = vcmp.lt.s32.totalorder %v53, %v55
    %vm58 = vmpackc.low %vm57, %vm56
    %vm59 = vmand %vm37, %vm51
    %vm60 = vmand %vm44, %vm58
    %v61 = vunpack.c.l.b16 %v29
    %v62 = vunpack.c.h.b16 %v29
    %v63 = vunpack.c.l.b16 2031647
    %v64 = vunpack.c.h.b16 2031647
    %vm65 = vcmp.ne.s32.totalorder %v61, %v63
    %vm66 = vcmp.ne.s32.totalorder %v62, %v64
    %vm67 = vmpackc.low %vm66, %vm65
    %v68 = vunpack.c.l.b16 %v30
    %v69 = vunpack.c.h.b16 %v30
    %v70 = vunpack.c.l.b16 2031647
    %v71 = vunpack.c.h.b16 2031647
    %vm72 = vcmp.ne.s32.totalorder %v68, %v70
    %vm73 = vcmp.ne.s32.totalorder %v69, %v71
    %vm74 = vmpackc.low %vm73, %vm72
    %vm75 = vmand %vm59, %vm67
    %vm76 = vmand %vm60, %vm74
    %v77 = vsel %vm75, %v29, 4294967295
    %v78 = vsel %vm76, %v30, 4294967295
    %79 = vst [vmem:[#allocation5] sm:$0xf] %v77
    %80 = vst [vmem:[#allocation5 + $0x4] sm:$0xf] %v78
    // Predicated region
    $region10: #{tpu_custom_call.1} parent=1 // pred_check
      _
    $region11: #{tpu_custom_call.1} parent=1 // pred_check_branch
      %82 = sbr.rel (0) target = $region13
    $region12: #{tpu_custom_call.1} parent=1 // pred_region
      %84 = vsyncadd [#allocation4], 0
      %s85 = sshll.u32 [#allocation5], 4
      %s86 = int_to_ptr.vmem [resolvable:$true] %s85
      %s87 = sshll.u32 %s1, 4
      %s88 = int_to_ptr.hbm [resolvable:$true] %s87
      %93 = dma.vmem_to_hbm [thread:$0]  %s86, 128, %s88, [#allocation4], 64, 64, 4
    $region13: #{tpu_custom_call.1} parent=1 // pred_fallthru
      _
    // Predicated region
    $region14: #{tpu_custom_call.1} parent=1 // pred_check
      _
    $region15: #{tpu_custom_call.1} parent=1 // pred_check_branch
      %95 = sbr.rel (0) target = $region17
    $region16: #{tpu_custom_call.1} parent=1 // pred_region
      %97 = dma.done [#allocation4], 128
    $region17: #{tpu_custom_call.1} parent=1 // pred_fallthru
      _
    %98 = vsyncpa [#allocation3], 1
    %99 = vsyncpa [#allocation4], 1

</llo_original>
